<compile_context>
chip_gen: v7x
topology: tpu7x:2x2x1
jax: 0.10.0
libtpu: 0.0.40
codegen_flags: <defaults>
</compile_context>

<pallas_src>
import functools

import jax
import jax.numpy as jnp
from jax import lax
from jax.experimental import pallas as pl
from jax.experimental.pallas import tpu as pltpu


_SQRT_HALF = 0.7071067811865476


def _gelu_exact(x):
    # Matches torch.nn.functional.gelu default (erf-based, non-approximate).
    return 0.5 * x * (1.0 + lax.erf(x * _SQRT_HALF))


def _round_up(n, m):
    return ((n + m - 1) // m) * m


def _choose_block(batch, block_b):
    """Pick a lane-aligned (multiple of 128) batch tile.

    Prefers >= 2 grid steps (so the "parallel" axis can shard across both
    TensorCores on v7x) while capping the tile at block_b.
    """
    block_b = max(128, _round_up(block_b, 128))
    if batch <= 128:
        return 128
    half = _round_up((batch + 1) // 2, 128)
    return min(block_b, half)


def _make_kernel(n_hidden_pairs):
    """Build the fused kernel for a static number of hidden (Linear, GELU) pairs."""

    def kernel(*refs):
        xT_ref = refs[0]          # (F, bb) float32 tile, batch on lanes
        o_ref = refs[-1]          # (1, bb) output slab, lane-dense store
        params = refs[1:-1]       # w0, b0, [wi, bi]*, w_end, b_end

        xT = xT_ref[...]

        # ln_start + GELU: (H, F) @ (F, bb) -> (H, bb)
        w0, b0 = params[0], params[1]
        h = jnp.dot(w0[...], xT, preferred_element_type=jnp.float32) + b0[...]
        h = _gelu_exact(h)
        # Dropout(p=0.0) is the identity -> no-op.

        # hidden layers: Linear + GELU (+ Dropout(0)): (H, H) @ (H, bb) -> (H, bb)
        idx = 2
        for _ in range(n_hidden_pairs):
            w, b = params[idx], params[idx + 1]
            idx += 2
            h = jnp.dot(w[...], h, preferred_element_type=jnp.float32) + b[...]
            h = _gelu_exact(h)

        # ln_end: (1, H) @ (H, bb) -> (1, bb); lane-dense, unmasked store.
        w_end, b_end = params[idx], params[idx + 1]
        y = jnp.dot(w_end[...], h, preferred_element_type=jnp.float32) + b_end[...]
        o_ref[...] = y.astype(o_ref.dtype)

    return kernel


@functools.partial(jax.jit, static_argnames=("block_b",))
def mlp_forward(x, w_start, b_start, hidden, w_end, b_end, block_b=2048):
    """Fused MLP forward.

    x:        (B, F) float32
    w_start:  (H, F), b_start: (H,)   -- torch nn.Linear layout (out, in)
    hidden:   tuple of (w, b) pairs, each w: (H, H), b: (H,)
    w_end:    (1, H), b_end: (1,)
    returns   (B, 1) float32
    """
    B, F = x.shape
    H = w_start.shape[0]

    bb = _choose_block(B, block_b)
    B_pad = _round_up(B, bb)
    num_tiles = B_pad // bb

    # Batch-on-lanes: transpose once in the wrapper, zero-pad the lane axis.
    xT = x.T
    if B_pad != B:
        xT = jnp.pad(xT, ((0, 0), (0, B_pad - B)))

    # Biases as column vectors so they broadcast over the lane (batch) axis.
    params = [w_start, b_start.reshape(H, 1)]
    for (w, b) in hidden:
        params.append(w)
        params.append(b.reshape(H, 1))
    params.append(w_end)
    params.append(b_end.reshape(1, 1))

    # Full, unblocked specs for the small weight/bias operands (constant index_map).
    def full_spec(arr):
        nd = arr.ndim
        return pl.BlockSpec(arr.shape, lambda i, _nd=nd: (0,) * _nd)

    yT = pl.pallas_call(
        _make_kernel(len(hidden)),
        out_shape=jax.ShapeDtypeStruct((1, B_pad), x.dtype),
        grid_spec=pltpu.PrefetchScalarGridSpec(
            num_scalar_prefetch=0,
            grid=(num_tiles,),
            in_specs=[pl.BlockSpec((F, bb), lambda i: (0, i))]  # x^T batch tiles
            + [full_spec(p) for p in params],
            out_specs=pl.BlockSpec((1, bb), lambda i: (0, i)),
        ),
        compiler_params=pltpu.CompilerParams(
            dimension_semantics=("parallel",),
            # v5e's scoped-VMEM default is only 16 MiB; give headroom for big
            # batch tiles. Working set stays well under v7x's 64 MiB per TC.
            vmem_limit_bytes=32 * 1024 * 1024,
        ),
    )(xT, *params)

    # Back to the (B, 1) module interface.
    return yT[0, :B].reshape(B, 1)


def _reference(x, w_start, b_start, hidden, w_end, b_end):
    h = _gelu_exact(x @ w_start.T + b_start)
    for (w, b) in hidden:
        h = _gelu_exact(h @ w.T + b)
    return h @ w_end.T + b_end


if __name__ == "__main__":
    # Module hyperparameters (small, consistent with the PyTorch __init__).
    n_features = 16
    hidden_dim_width = 32
    n_hidden_layers = 2   # ln_start + one hidden [Linear, GELU, Dropout] + ln_end
    batch = 512           # enough rows for a lane-dense 2-step "parallel" grid

    key = jax.random.PRNGKey(0)
    keys = jax.random.split(key, 4 + 2 * max(n_hidden_layers - 1, 0))

    # Deterministic params, torch nn.Linear layout: weight (out, in), bias (out,).
    x = jax.random.normal(keys[0], (batch, n_features), dtype=jnp.float32)
    w0 = jax.random.normal(keys[1], (hidden_dim_width, n_features), dtype=jnp.float32) * 0.1
    b0 = jax.random.normal(keys[2], (hidden_dim_width,), dtype=jnp.float32) * 0.1

    hidden = []
    for li in range(n_hidden_layers - 1):
        kw, kb = keys[3 + 2 * li], keys[4 + 2 * li]
        w = jax.random.normal(kw, (hidden_dim_width, hidden_dim_width), dtype=jnp.float32) * 0.1
        b = jax.random.normal(kb, (hidden_dim_width,), dtype=jnp.float32) * 0.1
        hidden.append((w, b))
    hidden = tuple(hidden)

    w_end = jax.random.normal(keys[-1], (1, hidden_dim_width), dtype=jnp.float32) * 0.1
    b_end = jax.random.normal(keys[-2], (1,), dtype=jnp.float32) * 0.1

    out = mlp_forward(x, w0, b0, hidden, w_end, b_end)
    out = jax.block_until_ready(out)

    ref = _reference(x, w0, b0, hidden, w_end, b_end)
    assert out.shape == (batch, 1), out.shape
    assert jnp.allclose(out, ref, atol=1e-5, rtol=1e-5), "mismatch vs reference"

    print("KERNEL_OK")
</pallas_src>

<mosaic_0001>
module attributes {stable_mosaic.version = 11 : i64} {
  func.func @kernel(%arg0: i32, %arg1: memref<16x256xf32, #tpu.memory_space<vmem>>, %arg2: memref<32x16xf32, #tpu.memory_space<vmem>>, %arg3: memref<32x1xf32, #tpu.memory_space<vmem>>, %arg4: memref<32x32xf32, #tpu.memory_space<vmem>>, %arg5: memref<32x1xf32, #tpu.memory_space<vmem>>, %arg6: memref<1x32xf32, #tpu.memory_space<vmem>>, %arg7: memref<1x1xf32, #tpu.memory_space<vmem>>, %arg8: memref<1x256xf32, #tpu.memory_space<vmem>>) attributes {dimension_semantics = [#tpu.dimension_semantics<parallel>], iteration_bounds = array<i64: 2>, scalar_prefetch = 0 : i64, scratch_operands = 0 : i64, tpu.core_type = #tpu.core_type<tc>, window_params = [{transform_indices = @transform_0, window_bounds = array<i64: 16, 256>}, {pipeline_mode = #tpu.pipeline_mode<synchronous>, transform_indices = @transform_1, window_bounds = array<i64: 32, 16>}, {pipeline_mode = #tpu.pipeline_mode<synchronous>, transform_indices = @transform_2, window_bounds = array<i64: 32, 1>}, {pipeline_mode = #tpu.pipeline_mode<synchronous>, transform_indices = @transform_3, window_bounds = array<i64: 32, 32>}, {pipeline_mode = #tpu.pipeline_mode<synchronous>, transform_indices = @transform_4, window_bounds = array<i64: 32, 1>}, {pipeline_mode = #tpu.pipeline_mode<synchronous>, transform_indices = @transform_5, window_bounds = array<i64: 1, 32>}, {pipeline_mode = #tpu.pipeline_mode<synchronous>, transform_indices = @transform_6, window_bounds = array<i64: 1, 1>}, {transform_indices = @transform_7, window_bounds = array<i64: 1, 256>}]} {
    %c0 = arith.constant 0 : index
    %c0_0 = arith.constant 0 : index
    %0 = vector.load %arg1[%c0, %c0_0] : memref<16x256xf32, #tpu.memory_space<vmem>>, vector<16x256xf32>
    %c0_1 = arith.constant 0 : index
    %c0_2 = arith.constant 0 : index
    %1 = vector.load %arg2[%c0_1, %c0_2] : memref<32x16xf32, #tpu.memory_space<vmem>>, vector<32x16xf32>
    %cst = arith.constant dense<0.000000e+00> : vector<32x256xf32>
    %2 = tpu.matmul %1, %0, %cst {dimension_numbers = #tpu.dot_dimension_numbers<[1], [0], [0], [1], [0, 0, 1, 1], [], []>} : vector<32x16xf32>, vector<16x256xf32>, vector<32x256xf32> -> vector<32x256xf32>
    %c0_3 = arith.constant 0 : index
    %c0_4 = arith.constant 0 : index
    %3 = vector.load %arg3[%c0_3, %c0_4] : memref<32x1xf32, #tpu.memory_space<vmem>>, vector<32x1xf32>
    %4 = vector.broadcast %3 : vector<32x1xf32> to vector<32x256xf32>
    %5 = arith.addf %2, %4 : vector<32x256xf32>
    %cst_5 = arith.constant 5.000000e-01 : f32
    %6 = vector.broadcast %cst_5 : f32 to vector<32x256xf32>
    %7 = arith.mulf %6, %5 : vector<32x256xf32>
    %cst_6 = arith.constant 0.707106769 : f32
    %8 = vector.broadcast %cst_6 : f32 to vector<32x256xf32>
    %9 = arith.mulf %5, %8 : vector<32x256xf32>
    %10 = math.erf %9 : vector<32x256xf32>
    %cst_7 = arith.constant 1.000000e+00 : f32
    %11 = vector.broadcast %cst_7 : f32 to vector<32x256xf32>
    %12 = arith.addf %11, %10 : vector<32x256xf32>
    %13 = arith.mulf %7, %12 : vector<32x256xf32>
    %c0_8 = arith.constant 0 : index
    %c0_9 = arith.constant 0 : index
    %14 = vector.load %arg4[%c0_8, %c0_9] : memref<32x32xf32, #tpu.memory_space<vmem>>, vector<32x32xf32>
    %cst_10 = arith.constant dense<0.000000e+00> : vector<32x256xf32>
    %15 = tpu.matmul %14, %13, %cst_10 {dimension_numbers = #tpu.dot_dimension_numbers<[1], [0], [0], [1], [0, 0, 1, 1], [], []>} : vector<32x32xf32>, vector<32x256xf32>, vector<32x256xf32> -> vector<32x256xf32>
    %c0_11 = arith.constant 0 : index
    %c0_12 = arith.constant 0 : index
    %16 = vector.load %arg5[%c0_11, %c0_12] : memref<32x1xf32, #tpu.memory_space<vmem>>, vector<32x1xf32>
    %17 = vector.broadcast %16 : vector<32x1xf32> to vector<32x256xf32>
    %18 = arith.addf %15, %17 : vector<32x256xf32>
    %cst_13 = arith.constant 5.000000e-01 : f32
    %19 = vector.broadcast %cst_13 : f32 to vector<32x256xf32>
    %20 = arith.mulf %19, %18 : vector<32x256xf32>
    %cst_14 = arith.constant 0.707106769 : f32
    %21 = vector.broadcast %cst_14 : f32 to vector<32x256xf32>
    %22 = arith.mulf %18, %21 : vector<32x256xf32>
    %23 = math.erf %22 : vector<32x256xf32>
    %cst_15 = arith.constant 1.000000e+00 : f32
    %24 = vector.broadcast %cst_15 : f32 to vector<32x256xf32>
    %25 = arith.addf %24, %23 : vector<32x256xf32>
    %26 = arith.mulf %20, %25 : vector<32x256xf32>
    %c0_16 = arith.constant 0 : index
    %c0_17 = arith.constant 0 : index
    %27 = vector.load %arg6[%c0_16, %c0_17] : memref<1x32xf32, #tpu.memory_space<vmem>>, vector<1x32xf32>
    %cst_18 = arith.constant dense<0.000000e+00> : vector<1x256xf32>
    %28 = tpu.matmul %27, %26, %cst_18 {dimension_numbers = #tpu.dot_dimension_numbers<[1], [0], [0], [1], [0, 0, 1, 1], [], []>} : vector<1x32xf32>, vector<32x256xf32>, vector<1x256xf32> -> vector<1x256xf32>
    %c0_19 = arith.constant 0 : index
    %c0_20 = arith.constant 0 : index
    %29 = vector.load %arg7[%c0_19, %c0_20] : memref<1x1xf32, #tpu.memory_space<vmem>>, vector<1x1xf32>
    %30 = vector.broadcast %29 : vector<1x1xf32> to vector<1x256xf32>
    %31 = arith.addf %28, %30 : vector<1x256xf32>
    %c0_21 = arith.constant 0 : index
    %c0_22 = arith.constant 0 : index
    %32 = vector.load %arg8[%c0_21, %c0_22] : memref<1x256xf32, #tpu.memory_space<vmem>>, vector<1x256xf32>
    tpu.vector_store %arg8[%c0_21, %c0_22], %31 {strides = array<i32>} : memref<1x256xf32, #tpu.memory_space<vmem>>, vector<1x256xf32>,
    return
  }
  func.func @transform_0(%arg0: i32) -> (i32, i32) {
    %c0_i32 = arith.constant 0 : i32
    %c0_i32_0 = arith.constant 0 : i32
    return %c0_i32, %arg0 : i32, i32
  }
  func.func @transform_1(%arg0: i32) -> (i32, i32) {
    %c0_i32 = arith.constant 0 : i32
    %c0_i32_0 = arith.constant 0 : i32
    %c0_i32_1 = arith.constant 0 : i32
    return %c0_i32, %c0_i32_0 : i32, i32
  }
  func.func @transform_2(%arg0: i32) -> (i32, i32) {
    %c0_i32 = arith.constant 0 : i32
    %c0_i32_0 = arith.constant 0 : i32
    %c0_i32_1 = arith.constant 0 : i32
    return %c0_i32, %c0_i32_0 : i32, i32
  }
  func.func @transform_3(%arg0: i32) -> (i32, i32) {
    %c0_i32 = arith.constant 0 : i32
    %c0_i32_0 = arith.constant 0 : i32
    %c0_i32_1 = arith.constant 0 : i32
    return %c0_i32, %c0_i32_0 : i32, i32
  }
  func.func @transform_4(%arg0: i32) -> (i32, i32) {
    %c0_i32 = arith.constant 0 : i32
    %c0_i32_0 = arith.constant 0 : i32
    %c0_i32_1 = arith.constant 0 : i32
    return %c0_i32, %c0_i32_0 : i32, i32
  }
  func.func @transform_5(%arg0: i32) -> (i32, i32) {
    %c0_i32 = arith.constant 0 : i32
    %c0_i32_0 = arith.constant 0 : i32
    %c0_i32_1 = arith.constant 0 : i32
    return %c0_i32, %c0_i32_0 : i32, i32
  }
  func.func @transform_6(%arg0: i32) -> (i32, i32) {
    %c0_i32 = arith.constant 0 : i32
    %c0_i32_0 = arith.constant 0 : i32
    %c0_i32_1 = arith.constant 0 : i32
    return %c0_i32, %c0_i32_0 : i32, i32
  }
  func.func @transform_7(%arg0: i32) -> (i32, i32) {
    %c0_i32 = arith.constant 0 : i32
    %c0_i32_0 = arith.constant 0 : i32
    return %c0_i32, %arg0 : i32, i32
  }
}

</mosaic_0001>

<llo_original>
// kernel: mlp_forward.1
$region0: #{mlp_forward.1}
  #allocation0 [shape = 'u32[]', space=smem, size = 0x4, offset = 0x4, fixed_abs, tag = 'smem constant byte address 0x4 - core index']
  #allocation1 [shape = 'u32[144,128]{1,0:T(1,128)}', space=vmem, size = 0x12000, scoped, tag = 'internal scratch']
  #allocation2 [shape = 'f32[1,1]{1,0:T(1,128)S(1)}', space=vmem, size = 0x200, scoped, tag = 'scoped memory for mlp_forward.1']
  %s0 = inlined_call_operand.vmem [shape: f32[16,512], index: 0, kind: input, shape index: {}]
  %s1 = inlined_call_operand.vmem [shape: f32[32,16], index: 1, kind: input, shape index: {}]
  %s2 = inlined_call_operand.vmem [shape: f32[32,1], index: 2, kind: input, shape index: {}]
  %s3 = inlined_call_operand.vmem [shape: f32[32,32], index: 3, kind: input, shape index: {}]
  %s4 = inlined_call_operand.vmem [shape: f32[32,1], index: 4, kind: input, shape index: {}]
  %s5 = inlined_call_operand.vmem [shape: f32[1,32], index: 5, kind: input, shape index: {}]
  %s6 = inlined_call_operand.<no memory space> [shape: f32[1,1], index: 6, kind: input, shape index: {}]
  %s7 = inlined_call_operand.hbm [shape: f32[1,512], index: 7, kind: output, shape index: {}]
  %s8 = sld [smem:[#allocation0]]
  $region84: #{mlp_forward.1} parent=0
    _
  %s10 = ssub.s32 1, %s8
  %s11 = scalar_select 0, %s10, %s8
  %v12 = vstv %s6
  %13 = vst [vmem:[#allocation2] sm:$0x1] %v12
  $region1: #{mlp_forward.1} parent=0
    #allocation3 [shape = 'u8[32768]{0}', space=vmem, size = 0x8000, scoped, tag = 'input window, operand 0']
    #allocation4 [shape = 'u8[2048]{0}', space=vmem, size = 0x800, scoped, tag = 'output window, operand 0']
    #allocation5 [shape = 's32[2]{0}', space=sflag, size = 0x8, scoped, tag = 'scoped memory for mlp_forward.1']
    %14 = vsyncpa [#allocation5], 0
    %s15 = scalar_lea.sflag [#allocation5], 1
    %16 = vsyncpa %s15, 0
    loop: start=0, step=1, limit=4
    $region2: #{mlp_forward.1} parent=1 // loop_pre_header
      _
    $region3: #{mlp_forward.1} parent=1 // loop_header
      %s18 = sphi 0, %s22
      %p19 = scmp.ge.s32.totalorder %s18, 4
      %s28 = sphi 0, %s30
      %s31 = sphi 0, %s28
      %s32 = sphi 0, %s31
      %s48 = sphi 0, %s32
      %s52 = sphi 0, %s52
      %s54 = sphi 0, %s52
      %s55 = sphi 0, %s54
      %s69 = sphi 0, %s55
      %s73 = sphi 0, %s73
      %s75 = sphi 0, %s73
      %s76 = sphi 0, %s75
      %s90 = sphi 0, %s76
      %s94 = sphi 0, %s94
      %s96 = sphi 0, %s94
      %s97 = sphi 0, %s96
      %s111 = sphi 0, %s97
      %s115 = sphi 0, %s115
      %s117 = sphi 0, %s115
      %s118 = sphi 0, %s117
      %s132 = sphi 0, %s118
      %s136 = sphi 0, %s136
      %s138 = sphi 0, %s136
      %s139 = sphi 0, %s138
      %s153 = sphi 0, %s139
      %s157 = sphi 0, %s157
      %s159 = sphi 0, %s157
      %s160 = sphi 0, %s159
      %s174 = sphi 0, %s160
      %s180 = sphi 0, %s182
      %s183 = sphi 0, %s180
      %s184 = sphi 0, %s183
      %s200 = sphi 0, %s184
    $region4: #{mlp_forward.1} parent=1 // loop_header_branch
      %21 = sbr.rel (%p19) target = $region8
    $region5: #{mlp_forward.1} parent=1 // loop_body
      %s23 = ssub.s32 %s18, 1
      %s24 = ssub.s32 %s18, 2
      %s25 = sadd.s32 %s18, 1
      %s26 = ssub.s32 %s18, %s25
      %p27 = scmp.eq.s32.totalorder %s26, 0
      %s29 = sadd.s32 %s28, 1
      %s30 = scalar_select %p27, %s28, %s29
      %p33 = pneg %p27
      %p34 = scmp.eq.s32.totalorder %s18, 1
      %p35 = por %p33, %p34
      %p36 = scmp.ne.s32.totalorder %s28, %s31
      %p37 = scmp.eq.s32.totalorder %s18, 0
      %p38 = por %p36, %p37
      %p39 = scmp.ne.s32.totalorder %s28, %s31
      %p40 = scmp.eq.s32.totalorder %s23, 1
      %p41 = por %p39, %p40
      %p42 = scmp.ne.s32.totalorder %s31, %s32
      %p43 = scmp.eq.s32.totalorder %s23, 0
      %p44 = por %p42, %p43
      %p45 = scmp.ne.s32.totalorder %s31, %s32
      %p46 = scmp.eq.s32.totalorder %s24, 1
      %p47 = por %p45, %p46
      %p49 = scmp.ne.s32.totalorder %s32, %s48
      %p50 = scmp.eq.s32.totalorder %s24, 0
      %p51 = por %p49, %p50
      %s53 = sadd.s32 %s52, 1
      %p56 = scmp.eq.s32.totalorder %s18, 1
      %p57 = scmp.ne.s32.totalorder %s52, %s54
      %p58 = scmp.eq.s32.totalorder %s18, 0
      %p59 = por %p57, %p58
      %p60 = scmp.ne.s32.totalorder %s52, %s54
      %p61 = scmp.eq.s32.totalorder %s23, 1
      %p62 = por %p60, %p61
      %p63 = scmp.ne.s32.totalorder %s54, %s55
      %p64 = scmp.eq.s32.totalorder %s23, 0
      %p65 = por %p63, %p64
      %p66 = scmp.ne.s32.totalorder %s54, %s55
      %p67 = scmp.eq.s32.totalorder %s24, 1
      %p68 = por %p66, %p67
      %p70 = scmp.ne.s32.totalorder %s55, %s69
      %p71 = scmp.eq.s32.totalorder %s24, 0
      %p72 = por %p70, %p71
      %s74 = sadd.s32 %s73, 1
      %p77 = scmp.eq.s32.totalorder %s18, 1
      %p78 = scmp.ne.s32.totalorder %s73, %s75
      %p79 = scmp.eq.s32.totalorder %s18, 0
      %p80 = por %p78, %p79
      %p81 = scmp.ne.s32.totalorder %s73, %s75
      %p82 = scmp.eq.s32.totalorder %s23, 1
      %p83 = por %p81, %p82
      %p84 = scmp.ne.s32.totalorder %s75, %s76
      %p85 = scmp.eq.s32.totalorder %s23, 0
      %p86 = por %p84, %p85
      %p87 = scmp.ne.s32.totalorder %s75, %s76
      %p88 = scmp.eq.s32.totalorder %s24, 1
      %p89 = por %p87, %p88
      %p91 = scmp.ne.s32.totalorder %s76, %s90
      %p92 = scmp.eq.s32.totalorder %s24, 0
      %p93 = por %p91, %p92
      %s95 = sadd.s32 %s94, 1
      %p98 = scmp.eq.s32.totalorder %s18, 1
      %p99 = scmp.ne.s32.totalorder %s94, %s96
      %p100 = scmp.eq.s32.totalorder %s18, 0
      %p101 = por %p99, %p100
      %p102 = scmp.ne.s32.totalorder %s94, %s96
      %p103 = scmp.eq.s32.totalorder %s23, 1
      %p104 = por %p102, %p103
      %p105 = scmp.ne.s32.totalorder %s96, %s97
      %p106 = scmp.eq.s32.totalorder %s23, 0
      %p107 = por %p105, %p106
      %p108 = scmp.ne.s32.totalorder %s96, %s97
      %p109 = scmp.eq.s32.totalorder %s24, 1
      %p110 = por %p108, %p109
      %p112 = scmp.ne.s32.totalorder %s97, %s111
      %p113 = scmp.eq.s32.totalorder %s24, 0
      %p114 = por %p112, %p113
      %s116 = sadd.s32 %s115, 1
      %p119 = scmp.eq.s32.totalorder %s18, 1
      %p120 = scmp.ne.s32.totalorder %s115, %s117
      %p121 = scmp.eq.s32.totalorder %s18, 0
      %p122 = por %p120, %p121
      %p123 = scmp.ne.s32.totalorder %s115, %s117
      %p124 = scmp.eq.s32.totalorder %s23, 1
      %p125 = por %p123, %p124
      %p126 = scmp.ne.s32.totalorder %s117, %s118
      %p127 = scmp.eq.s32.totalorder %s23, 0
      %p128 = por %p126, %p127
      %p129 = scmp.ne.s32.totalorder %s117, %s118
      %p130 = scmp.eq.s32.totalorder %s24, 1
      %p131 = por %p129, %p130
      %p133 = scmp.ne.s32.totalorder %s118, %s132
      %p134 = scmp.eq.s32.totalorder %s24, 0
      %p135 = por %p133, %p134
      %s137 = sadd.s32 %s136, 1
      %p140 = scmp.eq.s32.totalorder %s18, 1
      %p141 = scmp.ne.s32.totalorder %s136, %s138
      %p142 = scmp.eq.s32.totalorder %s18, 0
      %p143 = por %p141, %p142
      %p144 = scmp.ne.s32.totalorder %s136, %s138
      %p145 = scmp.eq.s32.totalorder %s23, 1
      %p146 = por %p144, %p145
      %p147 = scmp.ne.s32.totalorder %s138, %s139
      %p148 = scmp.eq.s32.totalorder %s23, 0
      %p149 = por %p147, %p148
      %p150 = scmp.ne.s32.totalorder %s138, %s139
      %p151 = scmp.eq.s32.totalorder %s24, 1
      %p152 = por %p150, %p151
      %p154 = scmp.ne.s32.totalorder %s139, %s153
      %p155 = scmp.eq.s32.totalorder %s24, 0
      %p156 = por %p154, %p155
      %s158 = sadd.s32 %s157, 1
      %p161 = scmp.eq.s32.totalorder %s18, 1
      %p162 = scmp.ne.s32.totalorder %s157, %s159
      %p163 = scmp.eq.s32.totalorder %s18, 0
      %p164 = por %p162, %p163
      %p165 = scmp.ne.s32.totalorder %s157, %s159
      %p166 = scmp.eq.s32.totalorder %s23, 1
      %p167 = por %p165, %p166
      %p168 = scmp.ne.s32.totalorder %s159, %s160
      %p169 = scmp.eq.s32.totalorder %s23, 0
      %p170 = por %p168, %p169
      %p171 = scmp.ne.s32.totalorder %s159, %s160
      %p172 = scmp.eq.s32.totalorder %s24, 1
      %p173 = por %p171, %p172
      %p175 = scmp.ne.s32.totalorder %s160, %s174
      %p176 = scmp.eq.s32.totalorder %s24, 0
      %p177 = por %p175, %p176
      %s178 = ssub.s32 %s18, %s25
      %p179 = scmp.eq.s32.totalorder %s178, 0
      %s181 = sadd.s32 %s180, 1
      %s182 = scalar_select %p179, %s180, %s181
      %p185 = pneg %p179
      %p186 = scmp.eq.s32.totalorder %s18, 1
      %p187 = por %p185, %p186
      %p188 = scmp.ne.s32.totalorder %s180, %s183
      %p189 = scmp.eq.s32.totalorder %s18, 0
      %p190 = por %p188, %p189
      %p191 = scmp.ne.s32.totalorder %s180, %s183
      %p192 = scmp.eq.s32.totalorder %s23, 1
      %p193 = por %p191, %p192
      %p194 = scmp.ne.s32.totalorder %s183, %s184
      %p195 = scmp.eq.s32.totalorder %s23, 0
      %p196 = por %p194, %p195
      %p197 = scmp.ne.s32.totalorder %s183, %s184
      %p198 = scmp.eq.s32.totalorder %s24, 1
      %p199 = por %p197, %p198
      %p201 = scmp.ne.s32.totalorder %s184, %s200
      %p202 = scmp.eq.s32.totalorder %s24, 0
      %p203 = por %p201, %p202
      %p204 = scmp.le.s32.totalorder 1, %s18
      %p205 = scmp.lt.s32.totalorder %s18, 3
      %p206 = pnand %p204, %p205
      %p207 = pneg %p206
      // Predicated region
      $region9: #{mlp_forward.1} parent=5 // pred_check
        _
      $region10: #{mlp_forward.1} parent=5 // pred_check_branch
        %209 = sbr.rel (%p206) target = $region12
      $region11: #{mlp_forward.1} parent=5 // pred_region
        %s210 = ssub.s32 %s18, 1
        // Predicated region
        $region13: #{mlp_forward.1} parent=11 // pred_check
          %p211 = pneg %p65
        $region14: #{mlp_forward.1} parent=11 // pred_check_branch
          %213 = sbr.rel (%p211) target = $region16
        $region15: #{mlp_forward.1} parent=11 // pred_region
          _
        $region16: #{mlp_forward.1} parent=11 // pred_fallthru
          _
        // Predicated region
        $region17: #{mlp_forward.1} parent=11 // pred_check
          %p214 = pneg %p86
        $region18: #{mlp_forward.1} parent=11 // pred_check_branch
          %216 = sbr.rel (%p214) target = $region20
        $region19: #{mlp_forward.1} parent=11 // pred_region
          _
        $region20: #{mlp_forward.1} parent=11 // pred_fallthru
          _
        // Predicated region
        $region21: #{mlp_forward.1} parent=11 // pred_check
          %p217 = pneg %p107
        $region22: #{mlp_forward.1} parent=11 // pred_check_branch
          %219 = sbr.rel (%p217) target = $region24
        $region23: #{mlp_forward.1} parent=11 // pred_region
          _
        $region24: #{mlp_forward.1} parent=11 // pred_fallthru
          _
        // Predicated region
        $region25: #{mlp_forward.1} parent=11 // pred_check
          %p220 = pneg %p128
        $region26: #{mlp_forward.1} parent=11 // pred_check_branch
          %222 = sbr.rel (%p220) target = $region28
        $region27: #{mlp_forward.1} parent=11 // pred_region
          _
        $region28: #{mlp_forward.1} parent=11 // pred_fallthru
          _
        // Predicated region
        $region29: #{mlp_forward.1} parent=11 // pred_check
          %p223 = pneg %p149
        $region30: #{mlp_forward.1} parent=11 // pred_check_branch
          %225 = sbr.rel (%p223) target = $region32
        $region31: #{mlp_forward.1} parent=11 // pred_region
          _
        $region32: #{mlp_forward.1} parent=11 // pred_fallthru
          _
        // Predicated region
        $region33: #{mlp_forward.1} parent=11 // pred_check
          %p226 = pneg %p170
        $region34: #{mlp_forward.1} parent=11 // pred_check_branch
          %228 = sbr.rel (%p226) target = $region36
        $region35: #{mlp_forward.1} parent=11 // pred_region
          _
        $region36: #{mlp_forward.1} parent=11 // pred_fallthru
          _
      $region12: #{mlp_forward.1} parent=5 // pred_fallthru
        _
      %p229 = scmp.lt.s32.totalorder %s18, 2
      // Predicated region
      $region37: #{mlp_forward.1} parent=5 // pred_check
        %p230 = pneg %p229
      $region38: #{mlp_forward.1} parent=5 // pred_check_branch
        %232 = sbr.rel (%p230) target = $region40
      $region39: #{mlp_forward.1} parent=5 // pred_region
        // Predicated region
        $region41: #{mlp_forward.1} parent=39 // pred_check
          %p233 = pneg %p38
        $region42: #{mlp_forward.1} parent=39 // pred_check_branch
          %235 = sbr.rel (%p233) target = $region44
        $region43: #{mlp_forward.1} parent=39 // pred_region
          %s236 = sand.u32 %s28, 1
          %s237 = sand.u32 %s28, 1
          %s238 = smul.addr %s237, 32
          %s239 = scalar_lea.vmem [#allocation3], %s238
          %s240 = smul.u32 2, %s18
          %s241 = smul.addr %s240, 8
          %s242 = scalar_lea.vmem %s0, %s241
          // Predicated region
          $region45: #{mlp_forward.1} parent=43 // pred_check
            _
          $region46: #{mlp_forward.1} parent=43 // pred_check_branch
            %244 = sbr.rel (0) target = $region48
          $region47: #{mlp_forward.1} parent=43 // pred_region
            // Predicated region
            $region49: #{mlp_forward.1} parent=47 // pred_check
              _
            $region50: #{mlp_forward.1} parent=47 // pred_check_branch
              %246 = sbr.rel (0) target = $region52
            $region51: #{mlp_forward.1} parent=47 // pred_region
              loop: start=0, step=1, limit=1
              $region53: #{mlp_forward.1} parent=51 // loop_pre_header
                _
              $region54: #{mlp_forward.1} parent=51 // loop_header
                %s248 = sphi 0, %s252
                %p249 = scmp.ge.s32.totalorder %s248, 1
                %s253 = sphi %s242, %s242
                %s254 = sphi %s239, %s239
              $region55: #{mlp_forward.1} parent=51 // loop_header_branch
                %251 = sbr.rel (%p249) target = $region59
              $region56: #{mlp_forward.1} parent=51 // loop_body
                %v255 = vld [vmem:[%s253] sm:$0xff]
                %256 = vst [vmem:[%s254] sm:$0xff] %v255
                %v257 = vld [vmem:[%s253 + $0x8] sm:$0xff]
                %258 = vst [vmem:[%s254 + $0x8] sm:$0xff] %v257
                %v259 = vld [vmem:[%s253 + $0x20] sm:$0xff]
                %260 = vst [vmem:[%s254 + $0x10] sm:$0xff] %v259
                %v261 = vld [vmem:[%s253 + $0x28] sm:$0xff]
                %262 = vst [vmem:[%s254 + $0x18] sm:$0xff] %v261
              $region57: #{mlp_forward.1} parent=51 // loop_footer
                %s252 = sadd.s32 1, %s248
              $region58: #{mlp_forward.1} parent=51 // loop_footer_branch
                %247 = sbr.rel target = $region54
              $region59: #{mlp_forward.1} parent=51 // loop_exit
                _
            $region52: #{mlp_forward.1} parent=47 // pred_fallthru
              _
            // Predicated region
            $region60: #{mlp_forward.1} parent=47 // pred_check
              _
            $region61: #{mlp_forward.1} parent=47 // pred_check_branch
              %264 = sbr.rel target = $region63
            $region62: #{mlp_forward.1} parent=47 // pred_region
              _
            $region63: #{mlp_forward.1} parent=47 // pred_fallthru
              _
          $region48: #{mlp_forward.1} parent=43 // pred_fallthru
            _
          %265 = vnop
        $region44: #{mlp_forward.1} parent=39 // pred_fallthru
          _
      $region40: #{mlp_forward.1} parent=5 // pred_fallthru
        _
      %p266 = scmp.le.s32.totalorder 1, %s18
      %p267 = scmp.lt.s32.totalorder %s18, 3
      %p268 = pnand %p266, %p267
      %p269 = pneg %p268
      // Predicated region
      $region64: #{mlp_forward.1} parent=5 // pred_check
        _
      $region65: #{mlp_forward.1} parent=5 // pred_check_branch
        %271 = sbr.rel (%p268) target = $region67
      $region66: #{mlp_forward.1} parent=5 // pred_region
        %s272 = ssub.s32 %s18, 1
        %s273 = sand.u32 %s31, 1
        %s274 = sand.u32 %s31, 1
        %s275 = smul.addr %s274, 32
        %s276 = scalar_lea.vmem [#allocation3], %s275
        // Predicated region
        $region68: #{mlp_forward.1} parent=66 // pred_check
          %p277 = pneg %p44
        $region69: #{mlp_forward.1} parent=66 // pred_check_branch
          %279 = sbr.rel (%p277) target = $region71
        $region70: #{mlp_forward.1} parent=66 // pred_region
          _
        $region71: #{mlp_forward.1} parent=66 // pred_fallthru
          _
        %s280 = sand.u32 %s31, 1
        %s281 = sand.u32 %s31, 1
        %s282 = smul.addr %s281, 32
        %s283 = scalar_lea.vmem [#allocation3], %s282
        %p284 = pneg %p44
        %p285 = pneg %p41
        %p286 = pneg %p65
        %p287 = pneg %p62
        %p288 = pneg %p86
        %p289 = pneg %p83
        %p290 = pneg %p107
        %p291 = pneg %p104
        %p292 = pneg %p128
        %p293 = pneg %p125
        %p294 = pneg %p149
        %p295 = pneg %p146
        %p296 = pneg %p170
        %p297 = pneg %p167
        %p298 = pneg %p196
        %p299 = pneg %p193
        %s300 = sand.u32 %s183, 1
        %s301 = scalar_lea.sflag [#allocation5], %s300
        %s302 = sand.u32 %s183, 1
        %s303 = smul.addr %s302, 2
        %s304 = scalar_lea.vmem [#allocation4], %s303
        %s305 = smul.u32 2, %s23
        %s306 = smul.u32 2, %s23
        %v307 = vld [vmem:[%s276] sm:$0xff]
        %v308 = vld [vmem:[%s276 + $0x8] sm:$0xff]
        %v309 = vld [vmem:[%s276 + $0x10] sm:$0xff]
        %v310 = vld [vmem:[%s276 + $0x18] sm:$0xff]
        %v311 = vld [vmem:[%s1] sm:$0xff]
        %v312 = vld [vmem:[%s1 + $0x8] sm:$0xff]
        %v313 = vld [vmem:[%s1 + $0x10] sm:$0xff]
        %v314 = vld [vmem:[%s1 + $0x18] sm:$0xff]
        %v315 = vld [vmem:[%s2] sm:$0xff]
        %v316 = vld [vmem:[%s2 + $0x8] sm:$0xff]
        %v317 = vld [vmem:[%s2 + $0x10] sm:$0xff]
        %v318 = vld [vmem:[%s2 + $0x18] sm:$0xff]
        %320 = vset.pattern.permute.xlu0 0
        %321 = vperm.xlu0 %320, %v315
        %v322 = vpop.permute.xlu0 %321
        %325 = vset.pattern.permute.xlu0 0
        %326 = vperm.xlu0 %325, %v316
        %v327 = vpop.permute.xlu0 %326
        %330 = vset.pattern.permute.xlu0 0
        %331 = vperm.xlu0 %330, %v317
        %v332 = vpop.permute.xlu0 %331
        %335 = vset.pattern.permute.xlu0 0
        %336 = vperm.xlu0 %335, %v318
        %v337 = vpop.permute.xlu0 %336
        %vm339 = vcmask 130048
        %v341 = vsel %vm339, %v311, 0
        %v344 = vsel %vm339, %v312, 0
        %v347 = vsel %vm339, %v313, 0
        %v350 = vsel %vm339, %v314, 0
        %352 = vmatprep.subr.mxu0 %v308
        %353 = vmatpush1.msra.mxu0 %v307
        %354 = vmatprep.subr.mxu0 %v310
        %355 = vmatpush1.msra.mxu0 %v309
        %356 = vmatprep.subr.mxu0 0.0
        %357 = vmatpush1.msra.mxu0 0.0
        %358 = vmatprep.subr.mxu0 0.0
        %359 = vmatpush1.msra.mxu0 0.0
        %360 = vmatprep.subr.mxu0 0.0
        %361 = vmatpush1.msra.mxu0 0.0
        %362 = vmatprep.subr.mxu0 0.0
        %363 = vmatpush1.msra.mxu0 0.0
        %364 = vmatprep.subr.mxu0 0.0
        %365 = vmatpush1.msra.mxu0 0.0
        %366 = vmatprep.subr.mxu0 0.0
        %367 = vmatpush1.msra.mxu0 0.0
        %368 = vmatprep.subr.mxu0 0.0
        %369 = vmatpush1.msra.mxu0 0.0
        %370 = vmatprep.subr.mxu0 0.0
        %371 = vmatpush1.msra.mxu0 0.0
        %372 = vmatprep.subr.mxu0 0.0
        %373 = vmatpush1.msra.mxu0 0.0
        %374 = vmatprep.subr.mxu0 0.0
        %375 = vmatpush1.msra.mxu0 0.0
        %376 = vmatprep.subr.mxu0 0.0
        %377 = vmatpush1.msra.mxu0 0.0
        %378 = vmatprep.subr.mxu0 0.0
        %379 = vmatpush1.msra.mxu0 0.0
        %380 = vmatprep.subr.mxu0 0.0
        %381 = vmatpush1.msra.mxu0 0.0
        %382 = vmatprep.subr.mxu0 0.0
        %383 = vmatpush1.msra.mxu0 0.0
        %384 = vmatprep.subr.mxu0 0.0
        %385 = vmatpush1.msra.mxu0 0.0
        %386 = vmatprep.subr.mxu0 0.0
        %387 = vmatpush1.msra.mxu0 0.0
        %388 = vmatprep.subr.mxu0 0.0
        %389 = vmatpush1.msra.mxu0 0.0
        %390 = vmatprep.subr.mxu0 0.0
        %391 = vmatpush1.msra.mxu0 0.0
        %392 = vmatprep.subr.mxu0 0.0
        %393 = vmatpush1.msra.mxu0 0.0
        %394 = vmatprep.subr.mxu0 0.0
        %395 = vmatpush1.msra.mxu0 0.0
        %396 = vmatprep.subr.mxu0 0.0
        %397 = vmatpush1.msra.mxu0 0.0
        %398 = vmatprep.subr.mxu0 0.0
        %399 = vmatpush1.msra.mxu0 0.0
        %400 = vmatprep.subr.mxu0 0.0
        %401 = vmatpush1.msra.mxu0 0.0
        %402 = vmatprep.subr.mxu0 0.0
        %403 = vmatpush1.msra.mxu0 0.0
        %404 = vmatprep.subr.mxu0 0.0
        %405 = vmatpush1.msra.mxu0 0.0
        %406 = vmatprep.subr.mxu0 0.0
        %407 = vmatpush1.msra.mxu0 0.0
        %408 = vmatprep.subr.mxu0 0.0
        %409 = vmatpush1.msra.mxu0 0.0
        %410 = vmatprep.subr.mxu0 0.0
        %411 = vmatpush1.msra.mxu0 0.0
        %412 = vmatprep.subr.mxu0 0.0
        %413 = vmatpush1.msra.mxu0 0.0
        %414 = vmatprep.subr.mxu0 0.0
        %415 = vmatpush1.msra.mxu0 0.0
        %416 = vmatprep.mubr.f32.mxu0 0.0
        %417 = vmatmul.mubr.f32.gmra.mrb[0].mxu0 %v341
        %v418 = vpop.f32.mrb[0].mxu0
        %v419 = vadd.f32 %v322, %v418
        %v420 = vpop.f32.mrb[0].mxu0
        %v421 = vadd.f32 %v322, %v420
        %422 = vmatprep.mubr.f32.mxu0 0.0
        %423 = vmatmul.mubr.f32.gmra.mrb[0].mxu0 %v344
        %v424 = vpop.f32.mrb[0].mxu0
        %v425 = vadd.f32 %v327, %v424
        %v426 = vpop.f32.mrb[0].mxu0
        %v427 = vadd.f32 %v327, %v426
        %428 = vmatprep.mubr.f32.mxu0 0.0
        %429 = vmatmul.mubr.f32.gmra.mrb[0].mxu0 %v347
        %v430 = vpop.f32.mrb[0].mxu0
        %v431 = vadd.f32 %v332, %v430
        %v432 = vpop.f32.mrb[0].mxu0
        %v433 = vadd.f32 %v332, %v432
        %434 = vmatprep.mubr.f32.mxu0 0.0
        %435 = vmatmul.mubr.f32.gmra.mrb[0].mxu0 %v350
        %v436 = vpop.f32.mrb[0].mxu0
        %v437 = vadd.f32 %v337, %v436
        %v438 = vpop.f32.mrb[0].mxu0
        %v439 = vadd.f32 %v337, %v438
        %440 = vdwg.mxu0
        %v441 = vmul.f32 %v419, 0.5
        %v442 = vmul.f32 %v421, 0.5
        %v443 = vmul.f32 %v425, 0.5
        %v444 = vmul.f32 %v427, 0.5
        %v445 = vmul.f32 %v431, 0.5
        %v446 = vmul.f32 %v433, 0.5
        %v447 = vmul.f32 %v437, 0.5
        %v448 = vmul.f32 %v439, 0.5
        %v449 = vmul.f32 %v419, 0.70710677
        %v450 = vmul.f32 %v421, 0.70710677
        %v451 = vmul.f32 %v425, 0.70710677
        %v452 = vmul.f32 %v427, 0.70710677
        %v453 = vmul.f32 %v431, 0.70710677
        %v454 = vmul.f32 %v433, 0.70710677
        %v455 = vmul.f32 %v437, 0.70710677
        %v456 = vmul.f32 %v439, 0.70710677
        %v457 = verf.f32.pop %v449
        %v458 = verf.f32.pop %v450
        %v459 = verf.f32.pop %v451
        %v460 = verf.f32.pop %v452
        %v461 = verf.f32.pop %v453
        %v462 = verf.f32.pop %v454
        %v463 = verf.f32.pop %v455
        %v464 = verf.f32.pop %v456
        %v465 = vadd.f32 %v457, 1.0
        %v466 = vadd.f32 %v458, 1.0
        %v467 = vadd.f32 %v459, 1.0
        %v468 = vadd.f32 %v460, 1.0
        %v469 = vadd.f32 %v461, 1.0
        %v470 = vadd.f32 %v462, 1.0
        %v471 = vadd.f32 %v463, 1.0
        %v472 = vadd.f32 %v464, 1.0
        %v473 = vmul.f32 %v441, %v465
        %v474 = vmul.f32 %v442, %v466
        %v475 = vmul.f32 %v443, %v467
        %v476 = vmul.f32 %v444, %v468
        %v477 = vmul.f32 %v445, %v469
        %v478 = vmul.f32 %v446, %v470
        %v479 = vmul.f32 %v447, %v471
        %v480 = vmul.f32 %v448, %v472
        %v481 = vld [vmem:[%s3] sm:$0xff]
        %v482 = vld [vmem:[%s3 + $0x8] sm:$0xff]
        %v483 = vld [vmem:[%s3 + $0x10] sm:$0xff]
        %v484 = vld [vmem:[%s3 + $0x18] sm:$0xff]
        %v485 = vld [vmem:[%s4] sm:$0xff]
        %v486 = vld [vmem:[%s4 + $0x8] sm:$0xff]
        %v487 = vld [vmem:[%s4 + $0x10] sm:$0xff]
        %v488 = vld [vmem:[%s4 + $0x18] sm:$0xff]
        %490 = vset.pattern.permute.xlu0 0
        %491 = vperm.xlu0 %490, %v485
        %v492 = vpop.permute.xlu0 %491
        %495 = vset.pattern.permute.xlu0 0
        %496 = vperm.xlu0 %495, %v486
        %v497 = vpop.permute.xlu0 %496
        %500 = vset.pattern.permute.xlu0 0
        %501 = vperm.xlu0 %500, %v487
        %v502 = vpop.permute.xlu0 %501
        %505 = vset.pattern.permute.xlu0 0
        %506 = vperm.xlu0 %505, %v488
        %v507 = vpop.permute.xlu0 %506
        %vm509 = vcmask 261120
        %v511 = vsel %vm509, %v481, 0
        %v514 = vsel %vm509, %v482, 0
        %v517 = vsel %vm509, %v483, 0
        %v520 = vsel %vm509, %v484, 0
        %522 = vmatprep.subr.mxu0 %v474
        %523 = vmatpush1.msra.mxu0 %v473
        %524 = vmatprep.subr.mxu0 %v476
        %525 = vmatpush1.msra.mxu0 %v475
        %526 = vmatprep.subr.mxu0 %v478
        %527 = vmatpush1.msra.mxu0 %v477
        %528 = vmatprep.subr.mxu0 %v480
        %529 = vmatpush1.msra.mxu0 %v479
        %530 = vmatprep.subr.mxu0 0.0
        %531 = vmatpush1.msra.mxu0 0.0
        %532 = vmatprep.subr.mxu0 0.0
        %533 = vmatpush1.msra.mxu0 0.0
        %534 = vmatprep.subr.mxu0 0.0
        %535 = vmatpush1.msra.mxu0 0.0
        %536 = vmatprep.subr.mxu0 0.0
        %537 = vmatpush1.msra.mxu0 0.0
        %538 = vmatprep.subr.mxu0 0.0
        %539 = vmatpush1.msra.mxu0 0.0
        %540 = vmatprep.subr.mxu0 0.0
        %541 = vmatpush1.msra.mxu0 0.0
        %542 = vmatprep.subr.mxu0 0.0
        %543 = vmatpush1.msra.mxu0 0.0
        %544 = vmatprep.subr.mxu0 0.0
        %545 = vmatpush1.msra.mxu0 0.0
        %546 = vmatprep.subr.mxu0 0.0
        %547 = vmatpush1.msra.mxu0 0.0
        %548 = vmatprep.subr.mxu0 0.0
        %549 = vmatpush1.msra.mxu0 0.0
        %550 = vmatprep.subr.mxu0 0.0
        %551 = vmatpush1.msra.mxu0 0.0
        %552 = vmatprep.subr.mxu0 0.0
        %553 = vmatpush1.msra.mxu0 0.0
        %554 = vmatprep.subr.mxu0 0.0
        %555 = vmatpush1.msra.mxu0 0.0
        %556 = vmatprep.subr.mxu0 0.0
        %557 = vmatpush1.msra.mxu0 0.0
        %558 = vmatprep.subr.mxu0 0.0
        %559 = vmatpush1.msra.mxu0 0.0
        %560 = vmatprep.subr.mxu0 0.0
        %561 = vmatpush1.msra.mxu0 0.0
        %562 = vmatprep.subr.mxu0 0.0
        %563 = vmatpush1.msra.mxu0 0.0
        %564 = vmatprep.subr.mxu0 0.0
        %565 = vmatpush1.msra.mxu0 0.0
        %566 = vmatprep.subr.mxu0 0.0
        %567 = vmatpush1.msra.mxu0 0.0
        %568 = vmatprep.subr.mxu0 0.0
        %569 = vmatpush1.msra.mxu0 0.0
        %570 = vmatprep.subr.mxu0 0.0
        %571 = vmatpush1.msra.mxu0 0.0
        %572 = vmatprep.subr.mxu0 0.0
        %573 = vmatpush1.msra.mxu0 0.0
        %574 = vmatprep.subr.mxu0 0.0
        %575 = vmatpush1.msra.mxu0 0.0
        %576 = vmatprep.subr.mxu0 0.0
        %577 = vmatpush1.msra.mxu0 0.0
        %578 = vmatprep.subr.mxu0 0.0
        %579 = vmatpush1.msra.mxu0 0.0
        %580 = vmatprep.subr.mxu0 0.0
        %581 = vmatpush1.msra.mxu0 0.0
        %582 = vmatprep.subr.mxu0 0.0
        %583 = vmatpush1.msra.mxu0 0.0
        %584 = vmatprep.subr.mxu0 0.0
        %585 = vmatpush1.msra.mxu0 0.0
        %586 = vmatprep.mubr.f32.mxu0 0.0
        %587 = vmatmul.mubr.f32.gmra.mrb[0].mxu0 %v511
        %v588 = vpop.f32.mrb[0].mxu0
        %v589 = vadd.f32 %v492, %v588
        %v590 = vpop.f32.mrb[0].mxu0
        %v591 = vadd.f32 %v492, %v590
        %592 = vmatprep.mubr.f32.mxu0 0.0
        %593 = vmatmul.mubr.f32.gmra.mrb[0].mxu0 %v514
        %v594 = vpop.f32.mrb[0].mxu0
        %v595 = vadd.f32 %v497, %v594
        %v596 = vpop.f32.mrb[0].mxu0
        %v597 = vadd.f32 %v497, %v596
        %598 = vmatprep.mubr.f32.mxu0 0.0
        %599 = vmatmul.mubr.f32.gmra.mrb[0].mxu0 %v517
        %v600 = vpop.f32.mrb[0].mxu0
        %v601 = vadd.f32 %v502, %v600
        %v602 = vpop.f32.mrb[0].mxu0
        %v603 = vadd.f32 %v502, %v602
        %604 = vmatprep.mubr.f32.mxu0 0.0
        %605 = vmatmul.mubr.f32.gmra.mrb[0].mxu0 %v520
        %v606 = vpop.f32.mrb[0].mxu0
        %v607 = vadd.f32 %v507, %v606
        %v608 = vpop.f32.mrb[0].mxu0
        %v609 = vadd.f32 %v507, %v608
        %610 = vdwg.mxu0
        %v611 = vmul.f32 %v589, 0.5
        %v612 = vmul.f32 %v591, 0.5
        %v613 = vmul.f32 %v595, 0.5
        %v614 = vmul.f32 %v597, 0.5
        %v615 = vmul.f32 %v601, 0.5
        %v616 = vmul.f32 %v603, 0.5
        %v617 = vmul.f32 %v607, 0.5
        %v618 = vmul.f32 %v609, 0.5
        %v619 = vmul.f32 %v589, 0.70710677
        %v620 = vmul.f32 %v591, 0.70710677
        %v621 = vmul.f32 %v595, 0.70710677
        %v622 = vmul.f32 %v597, 0.70710677
        %v623 = vmul.f32 %v601, 0.70710677
        %v624 = vmul.f32 %v603, 0.70710677
        %v625 = vmul.f32 %v607, 0.70710677
        %v626 = vmul.f32 %v609, 0.70710677
        %v627 = verf.f32.pop %v619
        %v628 = verf.f32.pop %v620
        %v629 = verf.f32.pop %v621
        %v630 = verf.f32.pop %v622
        %v631 = verf.f32.pop %v623
        %v632 = verf.f32.pop %v624
        %v633 = verf.f32.pop %v625
        %v634 = verf.f32.pop %v626
        %v635 = vadd.f32 %v627, 1.0
        %v636 = vadd.f32 %v628, 1.0
        %v637 = vadd.f32 %v629, 1.0
        %v638 = vadd.f32 %v630, 1.0
        %v639 = vadd.f32 %v631, 1.0
        %v640 = vadd.f32 %v632, 1.0
        %v641 = vadd.f32 %v633, 1.0
        %v642 = vadd.f32 %v634, 1.0
        %v643 = vmul.f32 %v611, %v635
        %v644 = vmul.f32 %v612, %v636
        %v645 = vmul.f32 %v613, %v637
        %v646 = vmul.f32 %v614, %v638
        %v647 = vmul.f32 %v615, %v639
        %v648 = vmul.f32 %v616, %v640
        %v649 = vmul.f32 %v617, %v641
        %v650 = vmul.f32 %v618, %v642
        %v651 = vld [vmem:[%s5] sm:$0x1]
        %v652 = vld [vmem:[#allocation2] sm:$0x1]
        %654 = vset.pattern.permute.xlu0 0
        %655 = vperm.xlu0 %654, %v652
        %v656 = vpop.permute.xlu0 %655
        %v658 = vlaneseq
        %v659 = vshrl.u32 %v658, 7
        %v660 = vsub.s32 0, %v659
        %v661 = vrot.slane %v656, %v660
        %v663 = vsel %vm509, %v651, 0
        %665 = vmatprep.subr.mxu0 %v644
        %666 = vmatpush1.msra.mxu0 %v643
        %667 = vmatprep.subr.mxu0 %v646
        %668 = vmatpush1.msra.mxu0 %v645
        %669 = vmatprep.subr.mxu0 %v648
        %670 = vmatpush1.msra.mxu0 %v647
        %671 = vmatprep.subr.mxu0 %v650
        %672 = vmatpush1.msra.mxu0 %v649
        %673 = vmatprep.subr.mxu0 0.0
        %674 = vmatpush1.msra.mxu0 0.0
        %675 = vmatprep.subr.mxu0 0.0
        %676 = vmatpush1.msra.mxu0 0.0
        %677 = vmatprep.subr.mxu0 0.0
        %678 = vmatpush1.msra.mxu0 0.0
        %679 = vmatprep.subr.mxu0 0.0
        %680 = vmatpush1.msra.mxu0 0.0
        %681 = vmatprep.subr.mxu0 0.0
        %682 = vmatpush1.msra.mxu0 0.0
        %683 = vmatprep.subr.mxu0 0.0
        %684 = vmatpush1.msra.mxu0 0.0
        %685 = vmatprep.subr.mxu0 0.0
        %686 = vmatpush1.msra.mxu0 0.0
        %687 = vmatprep.subr.mxu0 0.0
        %688 = vmatpush1.msra.mxu0 0.0
        %689 = vmatprep.subr.mxu0 0.0
        %690 = vmatpush1.msra.mxu0 0.0
        %691 = vmatprep.subr.mxu0 0.0
        %692 = vmatpush1.msra.mxu0 0.0
        %693 = vmatprep.subr.mxu0 0.0
        %694 = vmatpush1.msra.mxu0 0.0
        %695 = vmatprep.subr.mxu0 0.0
        %696 = vmatpush1.msra.mxu0 0.0
        %697 = vmatprep.subr.mxu0 0.0
        %698 = vmatpush1.msra.mxu0 0.0
        %699 = vmatprep.subr.mxu0 0.0
        %700 = vmatpush1.msra.mxu0 0.0
        %701 = vmatprep.subr.mxu0 0.0
        %702 = vmatpush1.msra.mxu0 0.0
        %703 = vmatprep.subr.mxu0 0.0
        %704 = vmatpush1.msra.mxu0 0.0
        %705 = vmatprep.subr.mxu0 0.0
        %706 = vmatpush1.msra.mxu0 0.0
        %707 = vmatprep.subr.mxu0 0.0
        %708 = vmatpush1.msra.mxu0 0.0
        %709 = vmatprep.subr.mxu0 0.0
        %710 = vmatpush1.msra.mxu0 0.0
        %711 = vmatprep.subr.mxu0 0.0
        %712 = vmatpush1.msra.mxu0 0.0
        %713 = vmatprep.subr.mxu0 0.0
        %714 = vmatpush1.msra.mxu0 0.0
        %715 = vmatprep.subr.mxu0 0.0
        %716 = vmatpush1.msra.mxu0 0.0
        %717 = vmatprep.subr.mxu0 0.0
        %718 = vmatpush1.msra.mxu0 0.0
        %719 = vmatprep.subr.mxu0 0.0
        %720 = vmatpush1.msra.mxu0 0.0
        %721 = vmatprep.subr.mxu0 0.0
        %722 = vmatpush1.msra.mxu0 0.0
        %723 = vmatprep.subr.mxu0 0.0
        %724 = vmatpush1.msra.mxu0 0.0
        %725 = vmatprep.subr.mxu0 0.0
        %726 = vmatpush1.msra.mxu0 0.0
        %727 = vmatprep.subr.mxu0 0.0
        %728 = vmatpush1.msra.mxu0 0.0
        %729 = vmatprep.mubr.f32.mxu0 0.0
        %730 = vmatmul.mubr.f32.gmra.mrb[0].mxu0 %v663
        %v731 = vpop.f32.mrb[0].mxu0
        %v732 = vadd.f32 %v661, %v731
        %v733 = vpop.f32.mrb[0].mxu0
        %v734 = vadd.f32 %v661, %v733
        %735 = vdwg.mxu0
        %v738 = vcombine.low %v732, %v734
        %v740 = vunpack.c.l.s4 1966171168
        %v741 = vunpack.c.0.s8 %v740
        %v742 = vlaneseq
        %v743 = vshrl.u32 %v742, 7
        %v744 = vsub.s32 %v741, %v743
        %v745 = vrot.slane %v738, %v744
        %v747 = vunpack.c.l.s4 1966171168
        %v748 = vunpack.c.0.s8 %v747
        %v749 = vlaneseq
        %v750 = vshrl.u32 %v749, 7
        %v751 = vsub.s32 %v748, %v750
        %v752 = vrot.slane %v745, %v751
        %v754 = vlaneseq
        %vm755 = vcmp.ge.s32.totalorder %v754, 0
        %vm756 = vcmp.lt.s32.totalorder %v754, 256
        %vm757 = vmand %vm755, %vm756
        %758 = vst.msk [vmem:[%s304] sm:$0x3] %vm757, %v752
        %s759 = sand.u32 %s183, 1
        %s760 = scalar_lea.sflag [#allocation5], %s759
        %s761 = sand.u32 %s183, 1
        %s762 = smul.addr %s761, 2
        %s763 = scalar_lea.vmem [#allocation4], %s762
        // Predicated region
        $region72: #{mlp_forward.1} parent=66 // pred_check
          %p764 = pneg %p193
        $region73: #{mlp_forward.1} parent=66 // pred_check_branch
          %766 = sbr.rel (%p764) target = $region75
        $region74: #{mlp_forward.1} parent=66 // pred_region
          %s767 = smul.u32 2, %s23
          %s769 = ssub.s32 32, 32
          %770 = vsyncadd %s760, %s769
          %s771 = smul.addr %s767, 16
          %s772 = scalar_lea.hbm %s7, %s771
          %s774 = sshll.u32 %s763, 4
          %s775 = int_to_ptr.vmem [resolvable:$true] %s774
          %777 = dma.vmem_to_hbm [thread:$0]  %s775, 32, %s772, %s760
        $region75: #{mlp_forward.1} parent=66 // pred_fallthru
          _
      $region67: #{mlp_forward.1} parent=5 // pred_fallthru
        _
      %p778 = scmp.le.s32.totalorder 2, %s18
      // Predicated region
      $region76: #{mlp_forward.1} parent=5 // pred_check
        %p779 = pneg %p778
      $region77: #{mlp_forward.1} parent=5 // pred_check_branch
        %781 = sbr.rel (%p779) target = $region79
      $region78: #{mlp_forward.1} parent=5 // pred_region
        %s782 = ssub.s32 %s18, 2
        // Predicated region
        $region80: #{mlp_forward.1} parent=78 // pred_check
          %p783 = pneg %p199
        $region81: #{mlp_forward.1} parent=78 // pred_check_branch
          %785 = sbr.rel (%p783) target = $region83
        $region82: #{mlp_forward.1} parent=78 // pred_region
          %s786 = sand.u32 %s184, 1
          %s787 = scalar_lea.sflag [#allocation5], %s786
          %s788 = sand.u32 %s184, 1
          %s789 = smul.addr %s788, 2
          %s790 = scalar_lea.vmem [#allocation4], %s789
          %791 = dma.done %s787, 32
        $region83: #{mlp_forward.1} parent=78 // pred_fallthru
          _
      $region79: #{mlp_forward.1} parent=5 // pred_fallthru
        _
    $region6: #{mlp_forward.1} parent=1 // loop_footer
      %s22 = sadd.s32 1, %s18
    $region7: #{mlp_forward.1} parent=1 // loop_footer_branch
      %17 = sbr.rel target = $region3
    $region8: #{mlp_forward.1} parent=1 // loop_exit
      _
    %792 = vsyncpa [#allocation5], 1
    %s793 = scalar_lea.sflag [#allocation5], 1
    %794 = vsyncpa %s793, 1

</llo_original>
